<compile_context>
chip_gen: v7x
topology: tpu7x:2x2x1
jax: 0.10.0
libtpu: 0.0.40
codegen_flags: <defaults>
</compile_context>

<pallas_src>
import jax
import jax.numpy as jnp
from jax.experimental import pallas as pl
from jax.experimental.pallas import tpu as pltpu

_LANE = 128      # vreg lane width (last dim)
_SUBLANE = 8     # vreg sublane width (second-to-last dim)


def _round_up(x, m):
    return ((x + m - 1) // m) * m


def _mlp_kernel(x_ref, w1_ref, b1_ref, w2_ref, b2_ref, o_ref):
    # x:  (tm, D_in)  compute dtype (bf16 or f32)
    # w1: (D_in, Hp)  compute dtype      b1: (1, Hp) f32
    # w2: (Hp,  Cp)   compute dtype      b2: (1, Cp) f32
    # o:  (tm,  Cp)   f32
    h = jnp.dot(x_ref[...], w1_ref[...], preferred_element_type=jnp.float32)
    h = jnp.maximum(h + b1_ref[...], 0.0)          # f32, lane-dense, unmasked
    # Cast only the matmul operand; accumulation stays f32 on the MXU.
    out = jnp.dot(h.astype(w2_ref.dtype), w2_ref[...],
                  preferred_element_type=jnp.float32)
    o_ref[...] = (out + b2_ref[...]).astype(o_ref.dtype)


def mlp_forward(x, w1, b1, w2, b2, *, compute_dtype=jnp.bfloat16,
                max_batch_tile=512):
    """Fused MLP forward: relu(x @ w1 + b1) @ w2 + b2.

    x:  (B, D_in)      w1: (D_in, H)   b1: (1, H)
    w2: (H, C)         b2: (1, C)      returns (B, C) in x.dtype
    """
    B, D_in = x.shape
    H = w1.shape[1]
    C = w2.shape[1]

    # Lane-dense padding of the hidden / output axes.
    Hp = _round_up(H, _LANE)
    Cp = _round_up(C, _LANE)

    # Batch tile: multiple of 8 sublanes, large enough to amortize the
    # ~0.35 us per-grid-step overhead, capped so activation tiles stay small
    # vs. VMEM (sized against v7x's 64 MiB physical budget).
    tm = min(max_batch_tile, _round_up(B, _SUBLANE))
    Bp = _round_up(B, tm)

    # Zero-fill the padded lanes (relu(0 + 0) = 0, so padded hidden lanes
    # contribute nothing downstream); padded batch rows are sliced off.
    w1p = jnp.zeros((D_in, Hp), compute_dtype).at[:, :H].set(w1.astype(compute_dtype))
    b1p = jnp.zeros((1, Hp), jnp.float32).at[:, :H].set(b1.astype(jnp.float32))
    w2p = jnp.zeros((Hp, Cp), compute_dtype).at[:H, :C].set(w2.astype(compute_dtype))
    b2p = jnp.zeros((1, Cp), jnp.float32).at[:, :C].set(b2.astype(jnp.float32))
    xp = jnp.zeros((Bp, D_in), compute_dtype).at[:B, :].set(x.astype(compute_dtype))

    out_padded = pl.pallas_call(
        _mlp_kernel,
        out_shape=jax.ShapeDtypeStruct((Bp, Cp), jnp.float32),
        grid_spec=pl.GridSpec(
            grid=(Bp // tm,),
            in_specs=[
                pl.BlockSpec((tm, D_in), lambda i: (i, 0)),   # x tiles pipelined
                pl.BlockSpec((D_in, Hp), lambda i: (0, 0)),   # weights resident
                pl.BlockSpec((1, Hp),    lambda i: (0, 0)),
                pl.BlockSpec((Hp, Cp),   lambda i: (0, 0)),
                pl.BlockSpec((1, Cp),    lambda i: (0, 0)),
            ],
            out_specs=pl.BlockSpec((tm, Cp), lambda i: (i, 0)),  # lane-dense store
        ),
        compiler_params=pltpu.CompilerParams(
            dimension_semantics=("parallel",),     # shard batch across cores
            vmem_limit_bytes=64 << 20,
        ),
    )(xp, w1p, b1p, w2p, b2p)

    return out_padded[:B, :C].astype(x.dtype)


def init_mlp_params(key, input_size, common_size, dtype=jnp.float32):
    """Deterministic init mirroring nn.Linear's default U(-1/sqrt(fan_in), +)."""
    hidden = input_size // 2
    k1, k2, k3, k4 = jax.random.split(key, 4)
    bound1 = 1.0 / jnp.sqrt(input_size)
    bound2 = 1.0 / jnp.sqrt(hidden)
    # stored as (in, out) == transpose of PyTorch's (out, in) weight
    w1 = jax.random.uniform(k1, (input_size, hidden), dtype, -bound1, bound1)
    b1 = jax.random.uniform(k2, (1, hidden), dtype, -bound1, bound1)
    w2 = jax.random.uniform(k3, (hidden, common_size), dtype, -bound2, bound2)
    b2 = jax.random.uniform(k4, (1, common_size), dtype, -bound2, bound2)
    return w1, b1, w2, b2


def mlp_reference(x, w1, b1, w2, b2):
    h = jnp.maximum(x @ w1 + b1, 0.0)
    return h @ w2 + b2


if __name__ == "__main__":
    key = jax.random.PRNGKey(0)
    kx, kp = jax.random.split(key)

    batch = 8
    input_size = 32
    common_size = 8

    x = jax.random.normal(kx, (batch, input_size), dtype=jnp.float32)
    w1, b1, w2, b2 = init_mlp_params(kp, input_size, common_size)

    ref = mlp_reference(x, w1, b1, w2, b2)

    # f32 compute path: bit-accurate check of the fused-kernel semantics.
    out_f32 = jax.block_until_ready(
        mlp_forward(x, w1, b1, w2, b2, compute_dtype=jnp.float32))
    assert out_f32.shape == (batch, common_size)
    assert jnp.allclose(out_f32, ref, atol=1e-5, rtol=1e-5)

    # Default bf16-operand / f32-accumulate path (the performance config).
    out_bf16 = jax.block_until_ready(mlp_forward(x, w1, b1, w2, b2))
    assert out_bf16.shape == (batch, common_size)
    assert jnp.allclose(out_bf16, ref, atol=5e-2, rtol=5e-2)

    print("KERNEL_OK")
</pallas_src>

<mosaic_0001>
module attributes {stable_mosaic.version = 11 : i64} {
  func.func @_mlp_kernel(%arg0: i32, %arg1: memref<8x32xf32, #tpu.memory_space<vmem>>, %arg2: memref<32x128xf32, #tpu.memory_space<vmem>>, %arg3: memref<1x128xf32, #tpu.memory_space<vmem>>, %arg4: memref<128x128xf32, #tpu.memory_space<vmem>>, %arg5: memref<1x128xf32, #tpu.memory_space<vmem>>, %arg6: memref<8x128xf32, #tpu.memory_space<vmem>>) attributes {dimension_semantics = [#tpu.dimension_semantics<parallel>], iteration_bounds = array<i64: 1>, scalar_prefetch = 0 : i64, scratch_operands = 0 : i64, tpu.core_type = #tpu.core_type<tc>, window_params = [{transform_indices = @transform_0, window_bounds = array<i64: 8, 32>}, {pipeline_mode = #tpu.pipeline_mode<synchronous>, transform_indices = @transform_1, window_bounds = array<i64: 32, 128>}, {pipeline_mode = #tpu.pipeline_mode<synchronous>, transform_indices = @transform_2, window_bounds = array<i64: 1, 128>}, {pipeline_mode = #tpu.pipeline_mode<synchronous>, transform_indices = @transform_3, window_bounds = array<i64: 128, 128>}, {pipeline_mode = #tpu.pipeline_mode<synchronous>, transform_indices = @transform_4, window_bounds = array<i64: 1, 128>}, {transform_indices = @transform_5, window_bounds = array<i64: 8, 128>}]} {
    %c0 = arith.constant 0 : index
    %c0_0 = arith.constant 0 : index
    %0 = vector.load %arg1[%c0, %c0_0] : memref<8x32xf32, #tpu.memory_space<vmem>>, vector<8x32xf32>
    %c0_1 = arith.constant 0 : index
    %c0_2 = arith.constant 0 : index
    %1 = vector.load %arg2[%c0_1, %c0_2] : memref<32x128xf32, #tpu.memory_space<vmem>>, vector<32x128xf32>
    %cst = arith.constant dense<0.000000e+00> : vector<8x128xf32>
    %2 = tpu.matmul %0, %1, %cst {dimension_numbers = #tpu.dot_dimension_numbers<[1], [0], [0], [1], [0, 0, 1, 1], [], []>} : vector<8x32xf32>, vector<32x128xf32>, vector<8x128xf32> -> vector<8x128xf32>
    %c0_3 = arith.constant 0 : index
    %c0_4 = arith.constant 0 : index
    %3 = vector.load %arg3[%c0_3, %c0_4] : memref<1x128xf32, #tpu.memory_space<vmem>>, vector<1x128xf32>
    %4 = vector.broadcast %3 : vector<1x128xf32> to vector<8x128xf32>
    %5 = arith.addf %2, %4 : vector<8x128xf32>
    %cst_5 = arith.constant 0.000000e+00 : f32
    %6 = vector.broadcast %cst_5 : f32 to vector<8x128xf32>
    %7 = arith.maximumf %5, %6 : vector<8x128xf32>
    %c0_6 = arith.constant 0 : index
    %c0_7 = arith.constant 0 : index
    %8 = vector.load %arg4[%c0_6, %c0_7] : memref<128x128xf32, #tpu.memory_space<vmem>>, vector<128x128xf32>
    %cst_8 = arith.constant dense<0.000000e+00> : vector<8x128xf32>
    %9 = tpu.matmul %7, %8, %cst_8 {dimension_numbers = #tpu.dot_dimension_numbers<[1], [0], [0], [1], [0, 0, 1, 1], [], []>} : vector<8x128xf32>, vector<128x128xf32>, vector<8x128xf32> -> vector<8x128xf32>
    %c0_9 = arith.constant 0 : index
    %c0_10 = arith.constant 0 : index
    %10 = vector.load %arg5[%c0_9, %c0_10] : memref<1x128xf32, #tpu.memory_space<vmem>>, vector<1x128xf32>
    %11 = vector.broadcast %10 : vector<1x128xf32> to vector<8x128xf32>
    %12 = arith.addf %9, %11 : vector<8x128xf32>
    %c0_11 = arith.constant 0 : index
    %c0_12 = arith.constant 0 : index
    %13 = vector.load %arg6[%c0_11, %c0_12] : memref<8x128xf32, #tpu.memory_space<vmem>>, vector<8x128xf32>
    tpu.vector_store %arg6[%c0_11, %c0_12], %12 {strides = array<i32>} : memref<8x128xf32, #tpu.memory_space<vmem>>, vector<8x128xf32>,
    return
  }
  func.func @transform_0(%arg0: i32) -> (i32, i32) {
    %c0_i32 = arith.constant 0 : i32
    %c0_i32_0 = arith.constant 0 : i32
    return %arg0, %c0_i32 : i32, i32
  }
  func.func @transform_1(%arg0: i32) -> (i32, i32) {
    %c0_i32 = arith.constant 0 : i32
    %c0_i32_0 = arith.constant 0 : i32
    %c0_i32_1 = arith.constant 0 : i32
    return %c0_i32, %c0_i32_0 : i32, i32
  }
  func.func @transform_2(%arg0: i32) -> (i32, i32) {
    %c0_i32 = arith.constant 0 : i32
    %c0_i32_0 = arith.constant 0 : i32
    %c0_i32_1 = arith.constant 0 : i32
    return %c0_i32, %c0_i32_0 : i32, i32
  }
  func.func @transform_3(%arg0: i32) -> (i32, i32) {
    %c0_i32 = arith.constant 0 : i32
    %c0_i32_0 = arith.constant 0 : i32
    %c0_i32_1 = arith.constant 0 : i32
    return %c0_i32, %c0_i32_0 : i32, i32
  }
  func.func @transform_4(%arg0: i32) -> (i32, i32) {
    %c0_i32 = arith.constant 0 : i32
    %c0_i32_0 = arith.constant 0 : i32
    %c0_i32_1 = arith.constant 0 : i32
    return %c0_i32, %c0_i32_0 : i32, i32
  }
  func.func @transform_5(%arg0: i32) -> (i32, i32) {
    %c0_i32 = arith.constant 0 : i32
    %c0_i32_0 = arith.constant 0 : i32
    return %arg0, %c0_i32 : i32, i32
  }
}

</mosaic_0001>

<llo_original>
// kernel: tpu_custom_call.1
$region0: #{tpu_custom_call.1}
  #allocation0 [shape = 'u32[]', space=smem, size = 0x4, offset = 0x4, fixed_abs, tag = 'smem constant byte address 0x4 - core index']
  #allocation1 [shape = 'u32[144,128]{1,0:T(1,128)}', space=vmem, size = 0x12000, scoped, tag = 'internal scratch']
  %s0 = inlined_call_operand.hbm [shape: f32[8,32], index: 0, kind: input, shape index: {}]
  %s1 = inlined_call_operand.hbm [shape: f32[32,128], index: 1, kind: input, shape index: {}]
  %s2 = inlined_call_operand.hbm [shape: f32[1,128], index: 2, kind: input, shape index: {}]
  %s3 = inlined_call_operand.hbm [shape: f32[128,128], index: 3, kind: input, shape index: {}]
  %s4 = inlined_call_operand.hbm [shape: f32[1,128], index: 4, kind: input, shape index: {}]
  %s5 = inlined_call_operand.hbm [shape: f32[8,128], index: 5, kind: output, shape index: {}]
  %s6 = sld [smem:[#allocation0]]
  $region50: #{tpu_custom_call.1} parent=0
    _
  %s8 = ssub.s32 1, %s6
  %s9 = scalar_select 0, %s8, %s6
  $region1: #{tpu_custom_call.1} parent=0
    #allocation2 [shape = 'u8[4096]{0}', space=vmem, size = 0x1000, scoped, tag = 'input window, operand 0, single buffered']
    #allocation3 [shape = 's32[1]{0}', space=sflag, size = 0x4, scoped, tag = 'scoped memory for tpu_custom_call.1']
    #allocation4 [shape = 's32[1]{0}', space=sflag, size = 0x4, scoped, tag = 'scoped memory for tpu_custom_call.1']
    #allocation5 [shape = 'u8[16384]{0}', space=vmem, size = 0x4000, scoped, tag = 'input window, operand 1, single buffered']
    #allocation6 [shape = 's32[1]{0}', space=sflag, size = 0x4, scoped, tag = 'scoped memory for tpu_custom_call.1']
    #allocation7 [shape = 'u8[512]{0}', space=vmem, size = 0x400, scoped, tag = 'input window, operand 2, single buffered']
    #allocation8 [shape = 'u8[65536]{0}', space=vmem, size = 0x10000, scoped, tag = 'input window, operand 3, single buffered']
    #allocation9 [shape = 's32[1]{0}', space=sflag, size = 0x4, scoped, tag = 'scoped memory for tpu_custom_call.1']
    #allocation10 [shape = 'u8[512]{0}', space=vmem, size = 0x400, scoped, tag = 'input window, operand 4, single buffered']
    #allocation11 [shape = 'u8[4096]{0}', space=vmem, size = 0x1000, scoped, tag = 'output window, operand 0, single buffered']
    %10 = vsyncpa [#allocation3], 0
    %11 = vsyncpa [#allocation6], 0
    %12 = vsyncpa [#allocation9], 0
    %13 = vsyncpa [#allocation4], 0
    // Predicated region
    $region2: #{tpu_custom_call.1} parent=1 // pred_check
      _
    $region3: #{tpu_custom_call.1} parent=1 // pred_check_branch
      %15 = sbr.rel (0) target = $region5
    $region4: #{tpu_custom_call.1} parent=1 // pred_region
      %s17 = ssub.s32 128, 128
      %18 = vsyncadd [#allocation3], %s17
      %s20 = sshll.u32 [#allocation2], 4
      %s21 = int_to_ptr.vmem [resolvable:$true] %s20
      %23 = dma.hbm_to_vmem [thread:$0]  %s0, 128, %s21, [#allocation3]
    $region5: #{tpu_custom_call.1} parent=1 // pred_fallthru
      _
    // Predicated region
    $region6: #{tpu_custom_call.1} parent=1 // pred_check
      _
    $region7: #{tpu_custom_call.1} parent=1 // pred_check_branch
      %25 = sbr.rel (0) target = $region9
    $region8: #{tpu_custom_call.1} parent=1 // pred_region
      %s27 = ssub.s32 512, 512
      %28 = vsyncadd [#allocation6], %s27
      %s29 = sshll.u32 [#allocation5], 4
      %s30 = int_to_ptr.vmem [resolvable:$true] %s29
      %35 = dma.hbm_to_vmem [thread:$0]  %s1, 512, %s30, [#allocation6], 128, 128, 8
    $region9: #{tpu_custom_call.1} parent=1 // pred_fallthru
      _
    // Predicated region
    $region10: #{tpu_custom_call.1} parent=1 // pred_check
      _
    $region11: #{tpu_custom_call.1} parent=1 // pred_check_branch
      %37 = sbr.rel (0) target = $region13
    $region12: #{tpu_custom_call.1} parent=1 // pred_region
      %s39 = ssub.s32 16, 16
      %40 = vsyncadd [#allocation6], %s39
      %s42 = sshll.u32 [#allocation7], 4
      %s43 = int_to_ptr.vmem [resolvable:$true] %s42
      %45 = dma.hbm_to_vmem [thread:$0]  %s2, 16, %s43, [#allocation6]
    $region13: #{tpu_custom_call.1} parent=1 // pred_fallthru
      _
    // Predicated region
    $region14: #{tpu_custom_call.1} parent=1 // pred_check
      _
    $region15: #{tpu_custom_call.1} parent=1 // pred_check_branch
      %47 = sbr.rel (0) target = $region17
    $region16: #{tpu_custom_call.1} parent=1 // pred_region
      %s49 = ssub.s32 2048, 2048
      %50 = vsyncadd [#allocation9], %s49
      %s51 = sshll.u32 [#allocation8], 4
      %s52 = int_to_ptr.vmem [resolvable:$true] %s51
      %57 = dma.hbm_to_vmem [thread:$0]  %s3, 2048, %s52, [#allocation9], 128, 128, 8
    $region17: #{tpu_custom_call.1} parent=1 // pred_fallthru
      _
    // Predicated region
    $region18: #{tpu_custom_call.1} parent=1 // pred_check
      _
    $region19: #{tpu_custom_call.1} parent=1 // pred_check_branch
      %59 = sbr.rel (0) target = $region21
    $region20: #{tpu_custom_call.1} parent=1 // pred_region
      %s61 = ssub.s32 16, 16
      %62 = vsyncadd [#allocation9], %s61
      %s64 = sshll.u32 [#allocation10], 4
      %s65 = int_to_ptr.vmem [resolvable:$true] %s64
      %67 = dma.hbm_to_vmem [thread:$0]  %s4, 16, %s65, [#allocation9]
    $region21: #{tpu_custom_call.1} parent=1 // pred_fallthru
      _
    // Predicated region
    $region22: #{tpu_custom_call.1} parent=1 // pred_check
      _
    $region23: #{tpu_custom_call.1} parent=1 // pred_check_branch
      %69 = sbr.rel (0) target = $region25
    $region24: #{tpu_custom_call.1} parent=1 // pred_region
      %70 = dma.done [#allocation3], 128
    $region25: #{tpu_custom_call.1} parent=1 // pred_fallthru
      _
    // Predicated region
    $region26: #{tpu_custom_call.1} parent=1 // pred_check
      _
    $region27: #{tpu_custom_call.1} parent=1 // pred_check_branch
      %72 = sbr.rel (0) target = $region29
    $region28: #{tpu_custom_call.1} parent=1 // pred_region
      %73 = dma.done [#allocation6], 512
    $region29: #{tpu_custom_call.1} parent=1 // pred_fallthru
      _
    // Predicated region
    $region30: #{tpu_custom_call.1} parent=1 // pred_check
      _
    $region31: #{tpu_custom_call.1} parent=1 // pred_check_branch
      %75 = sbr.rel (0) target = $region33
    $region32: #{tpu_custom_call.1} parent=1 // pred_region
      %76 = dma.done [#allocation6], 16
    $region33: #{tpu_custom_call.1} parent=1 // pred_fallthru
      _
    // Predicated region
    $region34: #{tpu_custom_call.1} parent=1 // pred_check
      _
    $region35: #{tpu_custom_call.1} parent=1 // pred_check_branch
      %78 = sbr.rel (0) target = $region37
    $region36: #{tpu_custom_call.1} parent=1 // pred_region
      %79 = dma.done [#allocation9], 2048
    $region37: #{tpu_custom_call.1} parent=1 // pred_fallthru
      _
    // Predicated region
    $region38: #{tpu_custom_call.1} parent=1 // pred_check
      _
    $region39: #{tpu_custom_call.1} parent=1 // pred_check_branch
      %81 = sbr.rel (0) target = $region41
    $region40: #{tpu_custom_call.1} parent=1 // pred_region
      %82 = dma.done [#allocation9], 16
    $region41: #{tpu_custom_call.1} parent=1 // pred_fallthru
      _
    %v83 = vld [vmem:[#allocation2] sm:$0xff]
    %v84 = vld [vmem:[#allocation5] sm:$0xff]
    %v85 = vld [vmem:[#allocation5 + $0x8] sm:$0xff]
    %v86 = vld [vmem:[#allocation5 + $0x10] sm:$0xff]
    %v87 = vld [vmem:[#allocation5 + $0x18] sm:$0xff]
    %v88 = vld [vmem:[#allocation7] sm:$0x1]
    %v90 = vlaneseq
    %v91 = vshrl.u32 %v90, 7
    %v92 = vsub.s32 0, %v91
    %v93 = vrot.slane %v88, %v92
    %vm95 = vcmask 261120
    %v97 = vsel %vm95, %v83, 0
    %99 = vmatprep.subr.mxu0 0.0
    %100 = vmatpush1.msra.mxu0 %v84
    %101 = vmatprep.subr.mxu0 0.0
    %102 = vmatpush1.msra.mxu0 %v85
    %103 = vmatprep.subr.mxu0 0.0
    %104 = vmatpush1.msra.mxu0 %v86
    %105 = vmatprep.subr.mxu0 0.0
    %106 = vmatpush1.msra.mxu0 %v87
    %107 = vmatprep.subr.mxu0 0.0
    %108 = vmatpush1.msra.mxu0 0.0
    %109 = vmatprep.subr.mxu0 0.0
    %110 = vmatpush1.msra.mxu0 0.0
    %111 = vmatprep.subr.mxu0 0.0
    %112 = vmatpush1.msra.mxu0 0.0
    %113 = vmatprep.subr.mxu0 0.0
    %114 = vmatpush1.msra.mxu0 0.0
    %115 = vmatprep.subr.mxu0 0.0
    %116 = vmatpush1.msra.mxu0 0.0
    %117 = vmatprep.subr.mxu0 0.0
    %118 = vmatpush1.msra.mxu0 0.0
    %119 = vmatprep.subr.mxu0 0.0
    %120 = vmatpush1.msra.mxu0 0.0
    %121 = vmatprep.subr.mxu0 0.0
    %122 = vmatpush1.msra.mxu0 0.0
    %123 = vmatprep.subr.mxu0 0.0
    %124 = vmatpush1.msra.mxu0 0.0
    %125 = vmatprep.subr.mxu0 0.0
    %126 = vmatpush1.msra.mxu0 0.0
    %127 = vmatprep.subr.mxu0 0.0
    %128 = vmatpush1.msra.mxu0 0.0
    %129 = vmatprep.subr.mxu0 0.0
    %130 = vmatpush1.msra.mxu0 0.0
    %131 = vmatprep.subr.mxu0 0.0
    %132 = vmatpush1.msra.mxu0 0.0
    %133 = vmatprep.subr.mxu0 0.0
    %134 = vmatpush1.msra.mxu0 0.0
    %135 = vmatprep.subr.mxu0 0.0
    %136 = vmatpush1.msra.mxu0 0.0
    %137 = vmatprep.subr.mxu0 0.0
    %138 = vmatpush1.msra.mxu0 0.0
    %139 = vmatprep.subr.mxu0 0.0
    %140 = vmatpush1.msra.mxu0 0.0
    %141 = vmatprep.subr.mxu0 0.0
    %142 = vmatpush1.msra.mxu0 0.0
    %143 = vmatprep.subr.mxu0 0.0
    %144 = vmatpush1.msra.mxu0 0.0
    %145 = vmatprep.subr.mxu0 0.0
    %146 = vmatpush1.msra.mxu0 0.0
    %147 = vmatprep.subr.mxu0 0.0
    %148 = vmatpush1.msra.mxu0 0.0
    %149 = vmatprep.subr.mxu0 0.0
    %150 = vmatpush1.msra.mxu0 0.0
    %151 = vmatprep.subr.mxu0 0.0
    %152 = vmatpush1.msra.mxu0 0.0
    %153 = vmatprep.subr.mxu0 0.0
    %154 = vmatpush1.msra.mxu0 0.0
    %155 = vmatprep.subr.mxu0 0.0
    %156 = vmatpush1.msra.mxu0 0.0
    %157 = vmatprep.subr.mxu0 0.0
    %158 = vmatpush1.msra.mxu0 0.0
    %159 = vmatprep.subr.mxu0 0.0
    %160 = vmatpush1.msra.mxu0 0.0
    %161 = vmatprep.subr.mxu0 0.0
    %162 = vmatpush1.msra.mxu0 0.0
    %163 = vmatprep.mubr.f32.mxu0 0.0
    %164 = vmatmul.mubr.f32.gmra.mrb[0].mxu0 %v97
    %v165 = vpop.f32.mrb[0].mxu0
    %v166 = vadd.f32 %v93, %v165
    %v167 = vpop.f32.mrb[0].mxu0
    %168 = vdwg.mxu0
    %v169 = vmax.f32 %v166, 0.0
    %v170 = vld [vmem:[#allocation8] sm:$0xff]
    %v171 = vld [vmem:[#allocation8 + $0x8] sm:$0xff]
    %v172 = vld [vmem:[#allocation8 + $0x10] sm:$0xff]
    %v173 = vld [vmem:[#allocation8 + $0x18] sm:$0xff]
    %v174 = vld [vmem:[#allocation8 + $0x20] sm:$0xff]
    %v175 = vld [vmem:[#allocation8 + $0x28] sm:$0xff]
    %v176 = vld [vmem:[#allocation8 + $0x30] sm:$0xff]
    %v177 = vld [vmem:[#allocation8 + $0x38] sm:$0xff]
    %v178 = vld [vmem:[#allocation8 + $0x40] sm:$0xff]
    %v179 = vld [vmem:[#allocation8 + $0x48] sm:$0xff]
    %v180 = vld [vmem:[#allocation8 + $0x50] sm:$0xff]
    %v181 = vld [vmem:[#allocation8 + $0x58] sm:$0xff]
    %v182 = vld [vmem:[#allocation8 + $0x60] sm:$0xff]
    %v183 = vld [vmem:[#allocation8 + $0x68] sm:$0xff]
    %v184 = vld [vmem:[#allocation8 + $0x70] sm:$0xff]
    %v185 = vld [vmem:[#allocation8 + $0x78] sm:$0xff]
    %v186 = vld [vmem:[#allocation10] sm:$0x1]
    %v188 = vlaneseq
    %v189 = vshrl.u32 %v188, 7
    %v190 = vsub.s32 0, %v189
    %v191 = vrot.slane %v186, %v190
    %193 = vmatprep.subr.mxu0 0.0
    %194 = vmatpush1.msra.mxu0 %v170
    %195 = vmatprep.subr.mxu0 0.0
    %196 = vmatpush1.msra.mxu0 %v171
    %197 = vmatprep.subr.mxu0 0.0
    %198 = vmatpush1.msra.mxu0 %v172
    %199 = vmatprep.subr.mxu0 0.0
    %200 = vmatpush1.msra.mxu0 %v173
    %201 = vmatprep.subr.mxu0 0.0
    %202 = vmatpush1.msra.mxu0 %v174
    %203 = vmatprep.subr.mxu0 0.0
    %204 = vmatpush1.msra.mxu0 %v175
    %205 = vmatprep.subr.mxu0 0.0
    %206 = vmatpush1.msra.mxu0 %v176
    %207 = vmatprep.subr.mxu0 0.0
    %208 = vmatpush1.msra.mxu0 %v177
    %209 = vmatprep.subr.mxu0 0.0
    %210 = vmatpush1.msra.mxu0 %v178
    %211 = vmatprep.subr.mxu0 0.0
    %212 = vmatpush1.msra.mxu0 %v179
    %213 = vmatprep.subr.mxu0 0.0
    %214 = vmatpush1.msra.mxu0 %v180
    %215 = vmatprep.subr.mxu0 0.0
    %216 = vmatpush1.msra.mxu0 %v181
    %217 = vmatprep.subr.mxu0 0.0
    %218 = vmatpush1.msra.mxu0 %v182
    %219 = vmatprep.subr.mxu0 0.0
    %220 = vmatpush1.msra.mxu0 %v183
    %221 = vmatprep.subr.mxu0 0.0
    %222 = vmatpush1.msra.mxu0 %v184
    %223 = vmatprep.subr.mxu0 0.0
    %224 = vmatpush1.msra.mxu0 %v185
    %225 = vmatprep.subr.mxu0 0.0
    %226 = vmatpush1.msra.mxu0 0.0
    %227 = vmatprep.subr.mxu0 0.0
    %228 = vmatpush1.msra.mxu0 0.0
    %229 = vmatprep.subr.mxu0 0.0
    %230 = vmatpush1.msra.mxu0 0.0
    %231 = vmatprep.subr.mxu0 0.0
    %232 = vmatpush1.msra.mxu0 0.0
    %233 = vmatprep.subr.mxu0 0.0
    %234 = vmatpush1.msra.mxu0 0.0
    %235 = vmatprep.subr.mxu0 0.0
    %236 = vmatpush1.msra.mxu0 0.0
    %237 = vmatprep.subr.mxu0 0.0
    %238 = vmatpush1.msra.mxu0 0.0
    %239 = vmatprep.subr.mxu0 0.0
    %240 = vmatpush1.msra.mxu0 0.0
    %241 = vmatprep.subr.mxu0 0.0
    %242 = vmatpush1.msra.mxu0 0.0
    %243 = vmatprep.subr.mxu0 0.0
    %244 = vmatpush1.msra.mxu0 0.0
    %245 = vmatprep.subr.mxu0 0.0
    %246 = vmatpush1.msra.mxu0 0.0
    %247 = vmatprep.subr.mxu0 0.0
    %248 = vmatpush1.msra.mxu0 0.0
    %249 = vmatprep.subr.mxu0 0.0
    %250 = vmatpush1.msra.mxu0 0.0
    %251 = vmatprep.subr.mxu0 0.0
    %252 = vmatpush1.msra.mxu0 0.0
    %253 = vmatprep.subr.mxu0 0.0
    %254 = vmatpush1.msra.mxu0 0.0
    %255 = vmatprep.subr.mxu0 0.0
    %256 = vmatpush1.msra.mxu0 0.0
    %257 = vmatprep.mubr.f32.mxu0 0.0
    %258 = vmatmul.mubr.f32.gmra.mrb[0].mxu0 %v169
    %v259 = vpop.f32.mrb[0].mxu0
    %v260 = vadd.f32 %v191, %v259
    %v261 = vpop.f32.mrb[0].mxu0
    %262 = vdwg.mxu0
    %263 = vst [vmem:[#allocation11] sm:$0xff] %v260
    // Predicated region
    $region42: #{tpu_custom_call.1} parent=1 // pred_check
      _
    $region43: #{tpu_custom_call.1} parent=1 // pred_check_branch
      %265 = sbr.rel (0) target = $region45
    $region44: #{tpu_custom_call.1} parent=1 // pred_region
      %s267 = ssub.s32 128, 128
      %268 = vsyncadd [#allocation4], %s267
      %s270 = sshll.u32 [#allocation11], 4
      %s271 = int_to_ptr.vmem [resolvable:$true] %s270
      %273 = dma.vmem_to_hbm [thread:$0]  %s271, 128, %s5, [#allocation4]
    $region45: #{tpu_custom_call.1} parent=1 // pred_fallthru
      _
    // Predicated region
    $region46: #{tpu_custom_call.1} parent=1 // pred_check
      _
    $region47: #{tpu_custom_call.1} parent=1 // pred_check_branch
      %275 = sbr.rel (0) target = $region49
    $region48: #{tpu_custom_call.1} parent=1 // pred_region
      %276 = dma.done [#allocation4], 128
    $region49: #{tpu_custom_call.1} parent=1 // pred_fallthru
      _
    %277 = vsyncpa [#allocation3], 1
    %278 = vsyncpa [#allocation6], 1
    %279 = vsyncpa [#allocation9], 1
    %280 = vsyncpa [#allocation4], 1

</llo_original>
